<compile_context>
chip_gen: v7x
topology: tpu7x:2x2x1
jax: 0.10.0
libtpu: 0.0.40
codegen_flags: <defaults>
</compile_context>

<pallas_src>
import math

import jax
import jax.numpy as jnp
from jax.experimental import pallas as pl
from jax.experimental.pallas import tpu as pltpu

LOG_STD_MAX = 2.0
LOG_STD_MIN = -20.0

_HALF_LOG_2PI = 0.5 * math.log(2.0 * math.pi)
_LOG_4 = math.log(4.0)


def make_actor_kernel(act_limit, act_dim, deterministic=False, with_logprob=True):
    """Builds the Pallas kernel body for the actor forward pass.

    Kernel refs (inputs then outputs, all VMEM blocks):
      obs, [eps], w0, b0, w1, b1, w_head, b_head, act_out, [logp_out]
    where w_head/b_head are the mu|log_std heads concatenated along the output
    axis (fused once at init time).
    """

    def kernel(obs_ref, *refs):
        refs = list(refs)
        eps_ref = None if deterministic else refs.pop(0)
        w0_ref, b0_ref, w1_ref, b1_ref, wh_ref, bh_ref = refs[:6]
        if with_logprob:
            act_ref, logp_ref = refs[6], refs[7]
        else:
            act_ref = refs[6]

        x = obs_ref[...]

        # --- MLP trunk: Linear -> ReLU -> Linear -> ReLU (output_activation == activation) ---
        h = jnp.dot(x, w0_ref[...], preferred_element_type=jnp.float32) + b0_ref[...]
        h = jnp.maximum(h, 0.0)
        h = jnp.dot(h, w1_ref[...], preferred_element_type=jnp.float32) + b1_ref[...]
        h = jnp.maximum(h, 0.0)

        # --- fused heads: a single matmul produces [mu | log_std] ---
        heads = jnp.dot(h, wh_ref[...], preferred_element_type=jnp.float32) + bh_ref[...]
        # Materialize the two halves once before the elementwise chain (both live
        # in the first vreg lane tile at act_dim=4; one shuffle, reused below).
        mu = heads[:, :act_dim]
        log_std = jnp.clip(heads[:, act_dim:], LOG_STD_MIN, LOG_STD_MAX)

        # --- rsample (reparameterized) or deterministic mean ---
        if deterministic:
            pi_action = mu
            eps = None
        else:
            std = jnp.exp(log_std)
            eps = eps_ref[...]
            pi_action = mu + std * eps

        # TODO(synk): the optional `act=` override from the PyTorch forward
        # (log-prob of an externally supplied action) is not implemented.
        if with_logprob:
            # Shared transcendental: e2 = exp(-2|a|) feeds both tanh(a) and the
            # tanh-squash correction (numerically-stable softplus form).
            abs_a = jnp.abs(pi_action)
            e2 = jnp.exp(-2.0 * abs_a)
            t = (1.0 - e2) / (1.0 + e2)
            tanh_a = jnp.where(pi_action < 0.0, -t, t)

            if deterministic:
                # (pi_action - mu) / std == 0 exactly.
                log_prob = -log_std - _HALF_LOG_2PI
            else:
                # (pi_action - mu) / std == eps  ->  no vector divide needed.
                log_prob = -0.5 * (eps * eps) - log_std - _HALF_LOG_2PI
            # 2*(log2 - a - softplus(-2a)) == log(4) - 2|a| - 2*log1p(exp(-2|a|))
            corr = _LOG_4 - 2.0 * abs_a - 2.0 * jnp.log1p(e2)
            # single fused cross-lane reduction
            logp_ref[...] = jnp.sum(log_prob - corr, axis=-1, keepdims=True)  # (B, 1)
            act_ref[...] = act_limit * tanh_a
        else:
            act_ref[...] = act_limit * jnp.tanh(pi_action)

    return kernel


def squashed_gaussian_actor_forward(obs, params, act_limit, eps=None,
                                    deterministic=False, with_logprob=True,
                                    batch_tile=None):
    """Runs the actor forward pass in one pallas_call.

    Returns (pi_action, logp_pi) with logp_pi=None when with_logprob=False.
    If `batch_tile` is given (multiple of 8, dividing B), the batch axis is
    tiled with a 1-D "parallel" grid (use for large rollout batches).
    """
    B, obs_dim = obs.shape
    act_dim = params["wh"].shape[1] // 2

    inputs = [obs]
    if not deterministic:
        if eps is None:
            raise ValueError("eps (standard-normal noise) is required when deterministic=False")
        inputs.append(eps)
    inputs += [params["w0"], params["b0"], params["w1"], params["b1"],
               params["wh"], params["bh"]]

    if with_logprob:
        out_shape = (jax.ShapeDtypeStruct((B, act_dim), jnp.float32),
                     jax.ShapeDtypeStruct((B, 1), jnp.float32))
    else:
        out_shape = jax.ShapeDtypeStruct((B, act_dim), jnp.float32)

    kernel = make_actor_kernel(act_limit, act_dim, deterministic, with_logprob)

    if batch_tile is None or batch_tile >= B:
        # Tiny-batch path: gridless, everything a full-array VMEM block.
        vmem = pl.BlockSpec(memory_space=pltpu.MemorySpace.VMEM)
        in_specs = [vmem] * len(inputs)
        out_specs = (vmem, vmem) if with_logprob else vmem
        call = pl.pallas_call(kernel, out_shape=out_shape,
                              in_specs=in_specs, out_specs=out_specs)
    else:
        if B % batch_tile != 0 or batch_tile % 8 != 0:
            raise ValueError("batch_tile must be a multiple of 8 that divides B")
        grid = (B // batch_tile,)

        def tiled(cols):
            return pl.BlockSpec((batch_tile, cols), lambda i: (i, 0))

        def replicated(arr):
            return pl.BlockSpec(arr.shape, lambda i: (0, 0))

        in_specs = [tiled(obs_dim)]
        if not deterministic:
            in_specs.append(tiled(act_dim))
        in_specs += [replicated(params["w0"]), replicated(params["b0"]),
                     replicated(params["w1"]), replicated(params["b1"]),
                     replicated(params["wh"]), replicated(params["bh"])]
        out_specs = (tiled(act_dim), tiled(1)) if with_logprob else tiled(act_dim)

        call = pl.pallas_call(
            kernel, out_shape=out_shape, grid=grid,
            in_specs=in_specs, out_specs=out_specs,
            compiler_params=pltpu.CompilerParams(
                dimension_semantics=("parallel",)))

    out = call(*inputs)
    if with_logprob:
        act_out, logp = out
        return act_out, logp.reshape(B)
    return out, None


def init_params(key, obs_dim, hidden_sizes, act_dim):
    """PyTorch-style (uniform +-1/sqrt(fan_in)) Linear init.

    The mu/log_std heads are fused here, once, into wh/bh (hoisted out of the
    per-call path). The un-fused heads are kept only for the reference check.
    """
    sizes = [obs_dim] + list(hidden_sizes)
    keys = jax.random.split(key, 8)

    def lin(kw, kb, fan_in, fan_out):
        bound = 1.0 / math.sqrt(fan_in)
        w = jax.random.uniform(kw, (fan_in, fan_out), jnp.float32, -bound, bound)
        b = jax.random.uniform(kb, (1, fan_out), jnp.float32, -bound, bound)
        return w, b

    w0, b0 = lin(keys[0], keys[1], sizes[0], sizes[1])
    w1, b1 = lin(keys[2], keys[3], sizes[1], sizes[2])
    wmu, bmu = lin(keys[4], keys[5], sizes[2], act_dim)
    wls, bls = lin(keys[6], keys[7], sizes[2], act_dim)
    return dict(
        w0=w0, b0=b0, w1=w1, b1=b1,
        wh=jnp.concatenate([wmu, wls], axis=1),
        bh=jnp.concatenate([bmu, bls], axis=1),
        # reference-only copies
        wmu=wmu, bmu=bmu, wls=wls, bls=bls,
    )


if __name__ == "__main__":
    # Small shapes consistent with the module: obs_dim=8, hidden=(32,32), act_dim=4.
    B, obs_dim, act_dim = 8, 8, 4
    hidden_sizes = (32, 32)
    act_limit = 1.5

    key = jax.random.PRNGKey(0)
    k_obs, k_eps, k_params, k_obs_big, k_eps_big = jax.random.split(key, 5)

    obs = jax.random.normal(k_obs, (B, obs_dim), dtype=jnp.float32)
    eps = jax.random.normal(k_eps, (B, act_dim), dtype=jnp.float32)
    params = init_params(k_params, obs_dim, hidden_sizes, act_dim)

    # Pure-JAX reference (same math, outside Pallas).
    def ref_forward(obs, eps, p, deterministic=False):
        h = jnp.maximum(obs @ p["w0"] + p["b0"], 0.0)
        h = jnp.maximum(h @ p["w1"] + p["b1"], 0.0)
        mu = h @ p["wmu"] + p["bmu"]
        log_std = jnp.clip(h @ p["wls"] + p["bls"], LOG_STD_MIN, LOG_STD_MAX)
        std = jnp.exp(log_std)
        a = mu if deterministic else mu + std * eps
        lp = jnp.sum(-0.5 * ((a - mu) / std) ** 2 - log_std
                     - 0.5 * math.log(2 * math.pi), axis=-1)
        lp -= jnp.sum(2.0 * (math.log(2.0) - a - jax.nn.softplus(-2.0 * a)), axis=-1)
        return act_limit * jnp.tanh(a), lp

    # --- main SAC path: stochastic sample + log-prob (gridless, tiny B) ---
    pi_action, logp_pi = squashed_gaussian_actor_forward(
        obs, params, act_limit, eps=eps, deterministic=False, with_logprob=True)
    jax.block_until_ready(pi_action)
    jax.block_until_ready(logp_pi)

    ref_act, ref_lp = ref_forward(obs, eps, params, deterministic=False)
    assert pi_action.shape == (B, act_dim) and logp_pi.shape == (B,)
    assert jnp.allclose(pi_action, ref_act, atol=1e-5, rtol=1e-4), "action mismatch"
    assert jnp.allclose(logp_pi, ref_lp, atol=1e-4, rtol=1e-4), "logp mismatch"

    # --- deterministic / no-logprob path: eps input and logp output are dropped ---
    det_act, det_lp = squashed_gaussian_actor_forward(
        obs, params, act_limit, deterministic=True, with_logprob=False)
    jax.block_until_ready(det_act)
    ref_det_act, _ = ref_forward(obs, eps, params, deterministic=True)
    assert det_lp is None
    assert jnp.allclose(det_act, ref_det_act, atol=1e-5, rtol=1e-4), "det action mismatch"

    # --- batched rollout path: 1-D "parallel" grid over batch (4 steps of 256 rows) ---
    Bb = 1024
    obs_b = jax.random.normal(k_obs_big, (Bb, obs_dim), dtype=jnp.float32)
    eps_b = jax.random.normal(k_eps_big, (Bb, act_dim), dtype=jnp.float32)
    act_b, lp_b = squashed_gaussian_actor_forward(
        obs_b, params, act_limit, eps=eps_b, deterministic=False,
        with_logprob=True, batch_tile=256)
    jax.block_until_ready(act_b)
    ref_act_b, ref_lp_b = ref_forward(obs_b, eps_b, params, deterministic=False)
    assert jnp.allclose(act_b, ref_act_b, atol=1e-5, rtol=1e-4), "batched action mismatch"
    assert jnp.allclose(lp_b, ref_lp_b, atol=1e-4, rtol=1e-4), "batched logp mismatch"

    print("KERNEL_OK")
</pallas_src>

<mosaic_0001>
module attributes {stable_mosaic.version = 11 : i64} {
  func.func @kernel(%arg0: memref<8x8xf32, #tpu.memory_space<vmem>>, %arg1: memref<8x4xf32, #tpu.memory_space<vmem>>, %arg2: memref<8x32xf32, #tpu.memory_space<vmem>>, %arg3: memref<1x32xf32, #tpu.memory_space<vmem>>, %arg4: memref<32x32xf32, #tpu.memory_space<vmem>>, %arg5: memref<1x32xf32, #tpu.memory_space<vmem>>, %arg6: memref<32x8xf32, #tpu.memory_space<vmem>>, %arg7: memref<1x8xf32, #tpu.memory_space<vmem>>, %arg8: memref<8x4xf32, #tpu.memory_space<vmem>>, %arg9: memref<8x1xf32, #tpu.memory_space<vmem>>) attributes {dimension_semantics = [], scalar_prefetch = 0 : i64, scratch_operands = 0 : i64, tpu.core_type = #tpu.core_type<tc>} {
    %c0 = arith.constant 0 : index
    %c0_0 = arith.constant 0 : index
    %0 = vector.load %arg0[%c0, %c0_0] : memref<8x8xf32, #tpu.memory_space<vmem>>, vector<8x8xf32>
    %c0_1 = arith.constant 0 : index
    %c0_2 = arith.constant 0 : index
    %1 = vector.load %arg2[%c0_1, %c0_2] : memref<8x32xf32, #tpu.memory_space<vmem>>, vector<8x32xf32>
    %cst = arith.constant dense<0.000000e+00> : vector<8x32xf32>
    %2 = tpu.matmul %0, %1, %cst {dimension_numbers = #tpu.dot_dimension_numbers<[1], [0], [0], [1], [0, 0, 1, 1], [], []>} : vector<8x8xf32>, vector<8x32xf32>, vector<8x32xf32> -> vector<8x32xf32>
    %c0_3 = arith.constant 0 : index
    %c0_4 = arith.constant 0 : index
    %3 = vector.load %arg3[%c0_3, %c0_4] : memref<1x32xf32, #tpu.memory_space<vmem>>, vector<1x32xf32>
    %4 = vector.broadcast %3 : vector<1x32xf32> to vector<8x32xf32>
    %5 = arith.addf %2, %4 : vector<8x32xf32>
    %cst_5 = arith.constant 0.000000e+00 : f32
    %6 = vector.broadcast %cst_5 : f32 to vector<8x32xf32>
    %7 = arith.maximumf %5, %6 : vector<8x32xf32>
    %c0_6 = arith.constant 0 : index
    %c0_7 = arith.constant 0 : index
    %8 = vector.load %arg4[%c0_6, %c0_7] : memref<32x32xf32, #tpu.memory_space<vmem>>, vector<32x32xf32>
    %cst_8 = arith.constant dense<0.000000e+00> : vector<8x32xf32>
    %9 = tpu.matmul %7, %8, %cst_8 {dimension_numbers = #tpu.dot_dimension_numbers<[1], [0], [0], [1], [0, 0, 1, 1], [], []>} : vector<8x32xf32>, vector<32x32xf32>, vector<8x32xf32> -> vector<8x32xf32>
    %c0_9 = arith.constant 0 : index
    %c0_10 = arith.constant 0 : index
    %10 = vector.load %arg5[%c0_9, %c0_10] : memref<1x32xf32, #tpu.memory_space<vmem>>, vector<1x32xf32>
    %11 = vector.broadcast %10 : vector<1x32xf32> to vector<8x32xf32>
    %12 = arith.addf %9, %11 : vector<8x32xf32>
    %cst_11 = arith.constant 0.000000e+00 : f32
    %13 = vector.broadcast %cst_11 : f32 to vector<8x32xf32>
    %14 = arith.maximumf %12, %13 : vector<8x32xf32>
    %c0_12 = arith.constant 0 : index
    %c0_13 = arith.constant 0 : index
    %15 = vector.load %arg6[%c0_12, %c0_13] : memref<32x8xf32, #tpu.memory_space<vmem>>, vector<32x8xf32>
    %cst_14 = arith.constant dense<0.000000e+00> : vector<8x8xf32>
    %16 = tpu.matmul %14, %15, %cst_14 {dimension_numbers = #tpu.dot_dimension_numbers<[1], [0], [0], [1], [0, 0, 1, 1], [], []>} : vector<8x32xf32>, vector<32x8xf32>, vector<8x8xf32> -> vector<8x8xf32>
    %c0_15 = arith.constant 0 : index
    %c0_16 = arith.constant 0 : index
    %17 = vector.load %arg7[%c0_15, %c0_16] : memref<1x8xf32, #tpu.memory_space<vmem>>, vector<1x8xf32>
    %18 = vector.broadcast %17 : vector<1x8xf32> to vector<8x8xf32>
    %19 = arith.addf %16, %18 : vector<8x8xf32>
    %20 = vector.extract_strided_slice %19 {offsets = [0, 0], sizes = [8, 4], strides = [1, 1]} : vector<8x8xf32> to vector<8x4xf32>
    %21 = vector.extract_strided_slice %19 {offsets = [0, 4], sizes = [8, 4], strides = [1, 1]} : vector<8x8xf32> to vector<8x4xf32>
    %cst_17 = arith.constant -2.000000e+01 : f32
    %cst_18 = arith.constant 2.000000e+00 : f32
    %22 = vector.broadcast %cst_17 : f32 to vector<8x4xf32>
    %23 = arith.maximumf %22, %21 : vector<8x4xf32>
    %24 = vector.broadcast %cst_18 : f32 to vector<8x4xf32>
    %25 = arith.minimumf %24, %23 : vector<8x4xf32>
    %26 = math.exp %25 : vector<8x4xf32>
    %c0_19 = arith.constant 0 : index
    %c0_20 = arith.constant 0 : index
    %27 = vector.load %arg1[%c0_19, %c0_20] : memref<8x4xf32, #tpu.memory_space<vmem>>, vector<8x4xf32>
    %28 = arith.mulf %26, %27 : vector<8x4xf32>
    %29 = arith.addf %20, %28 : vector<8x4xf32>
    %30 = math.absf %29 : vector<8x4xf32>
    %cst_21 = arith.constant -2.000000e+00 : f32
    %31 = vector.broadcast %cst_21 : f32 to vector<8x4xf32>
    %32 = arith.mulf %31, %30 : vector<8x4xf32>
    %33 = math.exp %32 : vector<8x4xf32>
    %cst_22 = arith.constant 1.000000e+00 : f32
    %34 = vector.broadcast %cst_22 : f32 to vector<8x4xf32>
    %35 = arith.subf %34, %33 : vector<8x4xf32>
    %cst_23 = arith.constant 1.000000e+00 : f32
    %36 = vector.broadcast %cst_23 : f32 to vector<8x4xf32>
    %37 = arith.addf %36, %33 : vector<8x4xf32>
    %38 = arith.divf %35, %37 : vector<8x4xf32>
    %cst_24 = arith.constant 0.000000e+00 : f32
    %39 = vector.broadcast %cst_24 : f32 to vector<8x4xf32>
    %40 = arith.cmpf olt, %29, %39 : vector<8x4xf32>
    %cst_25 = arith.constant 0.000000e+00 : f32
    %41 = vector.broadcast %cst_25 : f32 to vector<8x4xf32>
    %42 = arith.subf %41, %38 : vector<8x4xf32>
    %43 = arith.select %40, %42, %38 : vector<8x4xi1>, vector<8x4xf32>
    %44 = arith.mulf %27, %27 : vector<8x4xf32>
    %cst_26 = arith.constant -5.000000e-01 : f32
    %45 = vector.broadcast %cst_26 : f32 to vector<8x4xf32>
    %46 = arith.mulf %45, %44 : vector<8x4xf32>
    %47 = arith.subf %46, %25 : vector<8x4xf32>
    %cst_27 = arith.constant 0.918938517 : f32
    %48 = vector.broadcast %cst_27 : f32 to vector<8x4xf32>
    %49 = arith.subf %47, %48 : vector<8x4xf32>
    %cst_28 = arith.constant 2.000000e+00 : f32
    %50 = vector.broadcast %cst_28 : f32 to vector<8x4xf32>
    %51 = arith.mulf %50, %30 : vector<8x4xf32>
    %cst_29 = arith.constant 1.38629436 : f32
    %52 = vector.broadcast %cst_29 : f32 to vector<8x4xf32>
    %53 = arith.subf %52, %51 : vector<8x4xf32>
    %54 = math.log1p %33 : vector<8x4xf32>
    %cst_30 = arith.constant 2.000000e+00 : f32
    %55 = vector.broadcast %cst_30 : f32 to vector<8x4xf32>
    %56 = arith.mulf %55, %54 : vector<8x4xf32>
    %57 = arith.subf %53, %56 : vector<8x4xf32>
    %58 = arith.subf %49, %57 : vector<8x4xf32>
    %cst_31 = arith.constant dense<0.000000e+00> : vector<8xf32>
    %59 = vector.multi_reduction <add>, %58, %cst_31 [1] : vector<8x4xf32> to vector<8xf32>
    %60 = vector.shape_cast %59 : vector<8xf32> to vector<8x1xf32>
    %c0_32 = arith.constant 0 : index
    %c0_33 = arith.constant 0 : index
    %61 = vector.load %arg9[%c0_32, %c0_33] : memref<8x1xf32, #tpu.memory_space<vmem>>, vector<8x1xf32>
    tpu.vector_store %arg9[%c0_32, %c0_33], %60 {strides = array<i32>} : memref<8x1xf32, #tpu.memory_space<vmem>>, vector<8x1xf32>,
    %cst_34 = arith.constant 1.500000e+00 : f32
    %62 = vector.broadcast %cst_34 : f32 to vector<8x4xf32>
    %63 = arith.mulf %62, %43 : vector<8x4xf32>
    %c0_35 = arith.constant 0 : index
    %c0_36 = arith.constant 0 : index
    %64 = vector.load %arg8[%c0_35, %c0_36] : memref<8x4xf32, #tpu.memory_space<vmem>>, vector<8x4xf32>
    tpu.vector_store %arg8[%c0_35, %c0_36], %63 {strides = array<i32>} : memref<8x4xf32, #tpu.memory_space<vmem>>, vector<8x4xf32>,
    return
  }
}

</mosaic_0001>

<llo_original>
// kernel: tpu_custom_call.1
$region0: #{tpu_custom_call.1}
  #allocation0 [shape = 'u32[]', space=smem, size = 0x4, offset = 0x4, fixed_abs, tag = 'smem constant byte address 0x4 - core index']
  #allocation1 [shape = 'u32[144,128]{1,0:T(1,128)}', space=vmem, size = 0x12000, scoped, tag = 'internal scratch']
  %s0 = inlined_call_operand.vmem [shape: f32[8,8], index: 0, kind: input, shape index: {}]
  %s1 = inlined_call_operand.vmem [shape: f32[8,4], index: 1, kind: input, shape index: {}]
  %s2 = inlined_call_operand.vmem [shape: f32[8,32], index: 2, kind: input, shape index: {}]
  %s3 = inlined_call_operand.vmem [shape: f32[1,32], index: 3, kind: input, shape index: {}]
  %s4 = inlined_call_operand.vmem [shape: f32[32,32], index: 4, kind: input, shape index: {}]
  %s5 = inlined_call_operand.vmem [shape: f32[1,32], index: 5, kind: input, shape index: {}]
  %s6 = inlined_call_operand.vmem [shape: f32[32,8], index: 6, kind: input, shape index: {}]
  %s7 = inlined_call_operand.vmem [shape: f32[1,8], index: 7, kind: input, shape index: {}]
  %s8 = inlined_call_operand.vmem [shape: f32[8,4], index: 8, kind: output, shape index: {0}]
  %s9 = inlined_call_operand.vmem [shape: f32[8,1], index: 9, kind: output, shape index: {1}]
  %10 = xla_tuple %s8, %s9
  %s11 = sld [smem:[#allocation0]]
  $region50: #{tpu_custom_call.1} parent=0
    _
  %s13 = ssub.s32 1, %s11
  %s14 = scalar_select 0, %s13, %s11
  // Predicated region
  $region2: #{tpu_custom_call.1} parent=0 // pred_check
    _
  $region3: #{tpu_custom_call.1} parent=0 // pred_check_branch
    %16 = sbr.rel (0) target = $region5
  $region4: #{tpu_custom_call.1} parent=0 // pred_region
    _
  $region5: #{tpu_custom_call.1} parent=0 // pred_fallthru
    _
  // Predicated region
  $region6: #{tpu_custom_call.1} parent=0 // pred_check
    _
  $region7: #{tpu_custom_call.1} parent=0 // pred_check_branch
    %18 = sbr.rel (0) target = $region9
  $region8: #{tpu_custom_call.1} parent=0 // pred_region
    _
  $region9: #{tpu_custom_call.1} parent=0 // pred_fallthru
    _
  // Predicated region
  $region10: #{tpu_custom_call.1} parent=0 // pred_check
    _
  $region11: #{tpu_custom_call.1} parent=0 // pred_check_branch
    %20 = sbr.rel (0) target = $region13
  $region12: #{tpu_custom_call.1} parent=0 // pred_region
    _
  $region13: #{tpu_custom_call.1} parent=0 // pred_fallthru
    _
  // Predicated region
  $region14: #{tpu_custom_call.1} parent=0 // pred_check
    _
  $region15: #{tpu_custom_call.1} parent=0 // pred_check_branch
    %22 = sbr.rel (0) target = $region17
  $region16: #{tpu_custom_call.1} parent=0 // pred_region
    _
  $region17: #{tpu_custom_call.1} parent=0 // pred_fallthru
    _
  // Predicated region
  $region18: #{tpu_custom_call.1} parent=0 // pred_check
    _
  $region19: #{tpu_custom_call.1} parent=0 // pred_check_branch
    %24 = sbr.rel (0) target = $region21
  $region20: #{tpu_custom_call.1} parent=0 // pred_region
    _
  $region21: #{tpu_custom_call.1} parent=0 // pred_fallthru
    _
  // Predicated region
  $region22: #{tpu_custom_call.1} parent=0 // pred_check
    _
  $region23: #{tpu_custom_call.1} parent=0 // pred_check_branch
    %26 = sbr.rel (0) target = $region25
  $region24: #{tpu_custom_call.1} parent=0 // pred_region
    _
  $region25: #{tpu_custom_call.1} parent=0 // pred_fallthru
    _
  // Predicated region
  $region26: #{tpu_custom_call.1} parent=0 // pred_check
    _
  $region27: #{tpu_custom_call.1} parent=0 // pred_check_branch
    %28 = sbr.rel (0) target = $region29
  $region28: #{tpu_custom_call.1} parent=0 // pred_region
    _
  $region29: #{tpu_custom_call.1} parent=0 // pred_fallthru
    _
  // Predicated region
  $region30: #{tpu_custom_call.1} parent=0 // pred_check
    _
  $region31: #{tpu_custom_call.1} parent=0 // pred_check_branch
    %30 = sbr.rel (0) target = $region33
  $region32: #{tpu_custom_call.1} parent=0 // pred_region
    _
  $region33: #{tpu_custom_call.1} parent=0 // pred_fallthru
    _
  %v31 = vld [vmem:[%s0] sm:$0xff]
  %v32 = vld [vmem:[%s2] sm:$0xff]
  %v33 = vld [vmem:[%s3] sm:$0x1]
  %v35 = vlaneseq
  %v36 = vshrl.u32 %v35, 7
  %v37 = vsub.s32 0, %v36
  %v38 = vrot.slane %v33, %v37
  %vm40 = vcmask 64512
  %v42 = vsel %vm40, %v31, 0
  %44 = vmatprep.subr.mxu0 0.0
  %45 = vmatpush1.msra.mxu0 %v32
  %46 = vmatprep.subr.mxu0 0.0
  %47 = vmatpush1.msra.mxu0 0.0
  %48 = vmatprep.subr.mxu0 0.0
  %49 = vmatpush1.msra.mxu0 0.0
  %50 = vmatprep.subr.mxu0 0.0
  %51 = vmatpush1.msra.mxu0 0.0
  %52 = vmatprep.subr.mxu0 0.0
  %53 = vmatpush1.msra.mxu0 0.0
  %54 = vmatprep.subr.mxu0 0.0
  %55 = vmatpush1.msra.mxu0 0.0
  %56 = vmatprep.subr.mxu0 0.0
  %57 = vmatpush1.msra.mxu0 0.0
  %58 = vmatprep.subr.mxu0 0.0
  %59 = vmatpush1.msra.mxu0 0.0
  %60 = vmatprep.subr.mxu0 0.0
  %61 = vmatpush1.msra.mxu0 0.0
  %62 = vmatprep.subr.mxu0 0.0
  %63 = vmatpush1.msra.mxu0 0.0
  %64 = vmatprep.subr.mxu0 0.0
  %65 = vmatpush1.msra.mxu0 0.0
  %66 = vmatprep.subr.mxu0 0.0
  %67 = vmatpush1.msra.mxu0 0.0
  %68 = vmatprep.subr.mxu0 0.0
  %69 = vmatpush1.msra.mxu0 0.0
  %70 = vmatprep.subr.mxu0 0.0
  %71 = vmatpush1.msra.mxu0 0.0
  %72 = vmatprep.subr.mxu0 0.0
  %73 = vmatpush1.msra.mxu0 0.0
  %74 = vmatprep.subr.mxu0 0.0
  %75 = vmatpush1.msra.mxu0 0.0
  %76 = vmatprep.subr.mxu0 0.0
  %77 = vmatpush1.msra.mxu0 0.0
  %78 = vmatprep.subr.mxu0 0.0
  %79 = vmatpush1.msra.mxu0 0.0
  %80 = vmatprep.subr.mxu0 0.0
  %81 = vmatpush1.msra.mxu0 0.0
  %82 = vmatprep.subr.mxu0 0.0
  %83 = vmatpush1.msra.mxu0 0.0
  %84 = vmatprep.subr.mxu0 0.0
  %85 = vmatpush1.msra.mxu0 0.0
  %86 = vmatprep.subr.mxu0 0.0
  %87 = vmatpush1.msra.mxu0 0.0
  %88 = vmatprep.subr.mxu0 0.0
  %89 = vmatpush1.msra.mxu0 0.0
  %90 = vmatprep.subr.mxu0 0.0
  %91 = vmatpush1.msra.mxu0 0.0
  %92 = vmatprep.subr.mxu0 0.0
  %93 = vmatpush1.msra.mxu0 0.0
  %94 = vmatprep.subr.mxu0 0.0
  %95 = vmatpush1.msra.mxu0 0.0
  %96 = vmatprep.subr.mxu0 0.0
  %97 = vmatpush1.msra.mxu0 0.0
  %98 = vmatprep.subr.mxu0 0.0
  %99 = vmatpush1.msra.mxu0 0.0
  %100 = vmatprep.subr.mxu0 0.0
  %101 = vmatpush1.msra.mxu0 0.0
  %102 = vmatprep.subr.mxu0 0.0
  %103 = vmatpush1.msra.mxu0 0.0
  %104 = vmatprep.subr.mxu0 0.0
  %105 = vmatpush1.msra.mxu0 0.0
  %106 = vmatprep.subr.mxu0 0.0
  %107 = vmatpush1.msra.mxu0 0.0
  %108 = vmatprep.mubr.f32.mxu0 0.0
  %109 = vmatmul.mubr.f32.gmra.mrb[0].mxu0 %v42
  %v110 = vpop.f32.mrb[0].mxu0
  %v111 = vadd.f32 %v38, %v110
  %v112 = vpop.f32.mrb[0].mxu0
  %113 = vdwg.mxu0
  %v114 = vmax.f32 %v111, 0.0
  %v115 = vld [vmem:[%s4] sm:$0xff]
  %v116 = vld [vmem:[%s4 + $0x8] sm:$0xff]
  %v117 = vld [vmem:[%s4 + $0x10] sm:$0xff]
  %v118 = vld [vmem:[%s4 + $0x18] sm:$0xff]
  %v119 = vld [vmem:[%s5] sm:$0x1]
  %v121 = vlaneseq
  %v122 = vshrl.u32 %v121, 7
  %v123 = vsub.s32 0, %v122
  %v124 = vrot.slane %v119, %v123
  %vm126 = vcmask 261120
  %v128 = vsel %vm126, %v114, 0
  %130 = vmatprep.subr.mxu0 0.0
  %131 = vmatpush1.msra.mxu0 %v115
  %132 = vmatprep.subr.mxu0 0.0
  %133 = vmatpush1.msra.mxu0 %v116
  %134 = vmatprep.subr.mxu0 0.0
  %135 = vmatpush1.msra.mxu0 %v117
  %136 = vmatprep.subr.mxu0 0.0
  %137 = vmatpush1.msra.mxu0 %v118
  %138 = vmatprep.subr.mxu0 0.0
  %139 = vmatpush1.msra.mxu0 0.0
  %140 = vmatprep.subr.mxu0 0.0
  %141 = vmatpush1.msra.mxu0 0.0
  %142 = vmatprep.subr.mxu0 0.0
  %143 = vmatpush1.msra.mxu0 0.0
  %144 = vmatprep.subr.mxu0 0.0
  %145 = vmatpush1.msra.mxu0 0.0
  %146 = vmatprep.subr.mxu0 0.0
  %147 = vmatpush1.msra.mxu0 0.0
  %148 = vmatprep.subr.mxu0 0.0
  %149 = vmatpush1.msra.mxu0 0.0
  %150 = vmatprep.subr.mxu0 0.0
  %151 = vmatpush1.msra.mxu0 0.0
  %152 = vmatprep.subr.mxu0 0.0
  %153 = vmatpush1.msra.mxu0 0.0
  %154 = vmatprep.subr.mxu0 0.0
  %155 = vmatpush1.msra.mxu0 0.0
  %156 = vmatprep.subr.mxu0 0.0
  %157 = vmatpush1.msra.mxu0 0.0
  %158 = vmatprep.subr.mxu0 0.0
  %159 = vmatpush1.msra.mxu0 0.0
  %160 = vmatprep.subr.mxu0 0.0
  %161 = vmatpush1.msra.mxu0 0.0
  %162 = vmatprep.subr.mxu0 0.0
  %163 = vmatpush1.msra.mxu0 0.0
  %164 = vmatprep.subr.mxu0 0.0
  %165 = vmatpush1.msra.mxu0 0.0
  %166 = vmatprep.subr.mxu0 0.0
  %167 = vmatpush1.msra.mxu0 0.0
  %168 = vmatprep.subr.mxu0 0.0
  %169 = vmatpush1.msra.mxu0 0.0
  %170 = vmatprep.subr.mxu0 0.0
  %171 = vmatpush1.msra.mxu0 0.0
  %172 = vmatprep.subr.mxu0 0.0
  %173 = vmatpush1.msra.mxu0 0.0
  %174 = vmatprep.subr.mxu0 0.0
  %175 = vmatpush1.msra.mxu0 0.0
  %176 = vmatprep.subr.mxu0 0.0
  %177 = vmatpush1.msra.mxu0 0.0
  %178 = vmatprep.subr.mxu0 0.0
  %179 = vmatpush1.msra.mxu0 0.0
  %180 = vmatprep.subr.mxu0 0.0
  %181 = vmatpush1.msra.mxu0 0.0
  %182 = vmatprep.subr.mxu0 0.0
  %183 = vmatpush1.msra.mxu0 0.0
  %184 = vmatprep.subr.mxu0 0.0
  %185 = vmatpush1.msra.mxu0 0.0
  %186 = vmatprep.subr.mxu0 0.0
  %187 = vmatpush1.msra.mxu0 0.0
  %188 = vmatprep.subr.mxu0 0.0
  %189 = vmatpush1.msra.mxu0 0.0
  %190 = vmatprep.subr.mxu0 0.0
  %191 = vmatpush1.msra.mxu0 0.0
  %192 = vmatprep.subr.mxu0 0.0
  %193 = vmatpush1.msra.mxu0 0.0
  %194 = vmatprep.mubr.f32.mxu0 0.0
  %195 = vmatmul.mubr.f32.gmra.mrb[0].mxu0 %v128
  %v196 = vpop.f32.mrb[0].mxu0
  %v197 = vadd.f32 %v124, %v196
  %v198 = vpop.f32.mrb[0].mxu0
  %199 = vdwg.mxu0
  %v200 = vmax.f32 %v197, 0.0
  %v201 = vld [vmem:[%s6] sm:$0xff]
  %v202 = vld [vmem:[%s6 + $0x8] sm:$0xff]
  %v203 = vld [vmem:[%s6 + $0x10] sm:$0xff]
  %v204 = vld [vmem:[%s6 + $0x18] sm:$0xff]
  %v205 = vld [vmem:[%s7] sm:$0x1]
  %v207 = vlaneseq
  %v208 = vshrl.u32 %v207, 7
  %v209 = vsub.s32 0, %v208
  %v210 = vrot.slane %v205, %v209
  %v213 = vsel %vm126, %v200, 0
  %215 = vmatprep.subr.mxu0 0.0
  %216 = vmatpush1.msra.mxu0 %v201
  %217 = vmatprep.subr.mxu0 0.0
  %218 = vmatpush1.msra.mxu0 %v202
  %219 = vmatprep.subr.mxu0 0.0
  %220 = vmatpush1.msra.mxu0 %v203
  %221 = vmatprep.subr.mxu0 0.0
  %222 = vmatpush1.msra.mxu0 %v204
  %223 = vmatprep.subr.mxu0 0.0
  %224 = vmatpush1.msra.mxu0 0.0
  %225 = vmatprep.subr.mxu0 0.0
  %226 = vmatpush1.msra.mxu0 0.0
  %227 = vmatprep.subr.mxu0 0.0
  %228 = vmatpush1.msra.mxu0 0.0
  %229 = vmatprep.subr.mxu0 0.0
  %230 = vmatpush1.msra.mxu0 0.0
  %231 = vmatprep.subr.mxu0 0.0
  %232 = vmatpush1.msra.mxu0 0.0
  %233 = vmatprep.subr.mxu0 0.0
  %234 = vmatpush1.msra.mxu0 0.0
  %235 = vmatprep.subr.mxu0 0.0
  %236 = vmatpush1.msra.mxu0 0.0
  %237 = vmatprep.subr.mxu0 0.0
  %238 = vmatpush1.msra.mxu0 0.0
  %239 = vmatprep.subr.mxu0 0.0
  %240 = vmatpush1.msra.mxu0 0.0
  %241 = vmatprep.subr.mxu0 0.0
  %242 = vmatpush1.msra.mxu0 0.0
  %243 = vmatprep.subr.mxu0 0.0
  %244 = vmatpush1.msra.mxu0 0.0
  %245 = vmatprep.subr.mxu0 0.0
  %246 = vmatpush1.msra.mxu0 0.0
  %247 = vmatprep.subr.mxu0 0.0
  %248 = vmatpush1.msra.mxu0 0.0
  %249 = vmatprep.subr.mxu0 0.0
  %250 = vmatpush1.msra.mxu0 0.0
  %251 = vmatprep.subr.mxu0 0.0
  %252 = vmatpush1.msra.mxu0 0.0
  %253 = vmatprep.subr.mxu0 0.0
  %254 = vmatpush1.msra.mxu0 0.0
  %255 = vmatprep.subr.mxu0 0.0
  %256 = vmatpush1.msra.mxu0 0.0
  %257 = vmatprep.subr.mxu0 0.0
  %258 = vmatpush1.msra.mxu0 0.0
  %259 = vmatprep.subr.mxu0 0.0
  %260 = vmatpush1.msra.mxu0 0.0
  %261 = vmatprep.subr.mxu0 0.0
  %262 = vmatpush1.msra.mxu0 0.0
  %263 = vmatprep.subr.mxu0 0.0
  %264 = vmatpush1.msra.mxu0 0.0
  %265 = vmatprep.subr.mxu0 0.0
  %266 = vmatpush1.msra.mxu0 0.0
  %267 = vmatprep.subr.mxu0 0.0
  %268 = vmatpush1.msra.mxu0 0.0
  %269 = vmatprep.subr.mxu0 0.0
  %270 = vmatpush1.msra.mxu0 0.0
  %271 = vmatprep.subr.mxu0 0.0
  %272 = vmatpush1.msra.mxu0 0.0
  %273 = vmatprep.subr.mxu0 0.0
  %274 = vmatpush1.msra.mxu0 0.0
  %275 = vmatprep.subr.mxu0 0.0
  %276 = vmatpush1.msra.mxu0 0.0
  %277 = vmatprep.subr.mxu0 0.0
  %278 = vmatpush1.msra.mxu0 0.0
  %279 = vmatprep.mubr.f32.mxu0 0.0
  %280 = vmatmul.mubr.f32.gmra.mrb[0].mxu0 %v213
  %v281 = vpop.f32.mrb[0].mxu0
  %v282 = vadd.f32 %v210, %v281
  %v283 = vpop.f32.mrb[0].mxu0
  %284 = vdwg.mxu0
  %v285 = vmax.f32 %v282, -20.0
  %v286 = vmin.f32 %v285, 2.0
  %v287 = vmul.f32 %v286, 1.442695
  %v288 = vpow.pop %v287
  %v289 = vld [vmem:[%s1] sm:$0xff]
  %291 = vrot.lane.b32.xlu0 %v289, 4
  %v292 = vpop.permute.xlu0 %291
  %v294 = vmul.f32 %v288, %v292
  %296 = vrot.lane.b32.xlu0 %v294, 124
  %v297 = vpop.permute.xlu0 %296
  %v299 = vadd.f32 %v282, %v297
  %v300 = vand.u32 2147483647, %v299
  %v301 = vmul.f32 %v300, -2.0
  %v302 = vmul.f32 %v301, 1.442695
  %v303 = vpow.pop %v302
  %v304 = vsub.f32 1.0, %v303
  %v305 = vadd.f32 %v303, 1.0
  %v306 = vrcp.pop %v305
  %v307 = vmul.f32 %v304, %v306
  %vm308 = vcmp.lt.f32.partialorder %v299, 0.0
  %v309 = vsub.f32 0.0, %v307
  %v310 = vsel %vm308, %v309, %v307
  %v311 = vmul.f32 %v289, %v289
  %v312 = vmul.f32 %v311, -0.5
  %314 = vrot.lane.b32.xlu0 %v286, 124
  %v315 = vpop.permute.xlu0 %314
  %v317 = vsub.f32 %v312, %v315
  %v318 = vsub.f32 %v317, 0.9189385
  %v319 = vmul.f32 %v300, 2.0
  %v320 = vsub.f32 1.3862944, %v319
  %v321 = vadd.f32 %v303, 1.0
  %v322 = vlog2.pop %v321
  %v323 = vmul.f32 %v322, 0.6931472
  %v324 = vmul.f32 -0.5, %v303
  %v325 = vadd.f32 %v324, 1.0
  %v326 = vmul.f32 %v325, %v303
  %v327 = vand.u32 2147483647, %v303
  %vm328 = vcmp.lt.f32.partialorder %v327, 0.0004427343
  %v329 = vsel %vm328, %v326, %v323
  %v330 = vmul.f32 %v329, 2.0
  %v331 = vsub.f32 %v320, %v330
  %v332 = vsub.f32 %v318, %v331
  %vm333 = vcmask 31744
  %v334 = vsel %vm333, %v332, 0.0
  %335 = vadd.xlane.f32.xlu0 %v334
  %v336 = vpop.xlane.xlu0 %335
  %vm337 = vcmask 7168
  %338 = vst.msk [vmem:[%s9] sm:$0xff] %vm337, %v336
  %v339 = vmul.f32 %v310, 1.5
  %340 = vst.msk [vmem:[%s8] sm:$0xff] %vm333, %v339
  // Predicated region
  $region34: #{tpu_custom_call.1} parent=0 // pred_check
    _
  $region35: #{tpu_custom_call.1} parent=0 // pred_check_branch
    %342 = sbr.rel (0) target = $region37
  $region36: #{tpu_custom_call.1} parent=0 // pred_region
    _
  $region37: #{tpu_custom_call.1} parent=0 // pred_fallthru
    _
  // Predicated region
  $region38: #{tpu_custom_call.1} parent=0 // pred_check
    _
  $region39: #{tpu_custom_call.1} parent=0 // pred_check_branch
    %344 = sbr.rel (0) target = $region41
  $region40: #{tpu_custom_call.1} parent=0 // pred_region
    _
  $region41: #{tpu_custom_call.1} parent=0 // pred_fallthru
    _
  // Predicated region
  $region42: #{tpu_custom_call.1} parent=0 // pred_check
    _
  $region43: #{tpu_custom_call.1} parent=0 // pred_check_branch
    %346 = sbr.rel (0) target = $region45
  $region44: #{tpu_custom_call.1} parent=0 // pred_region
    _
  $region45: #{tpu_custom_call.1} parent=0 // pred_fallthru
    _
  // Predicated region
  $region46: #{tpu_custom_call.1} parent=0 // pred_check
    _
  $region47: #{tpu_custom_call.1} parent=0 // pred_check_branch
    %348 = sbr.rel (0) target = $region49
  $region48: #{tpu_custom_call.1} parent=0 // pred_region
    _
  $region49: #{tpu_custom_call.1} parent=0 // pred_fallthru
    _

</llo_original>
